<compile_context>
chip_gen: v5e
topology: v5e:2x2
jax: 0.10.0
libtpu: 0.0.40
codegen_flags: <defaults>
</compile_context>

<pallas_src>
import functools

import jax
import jax.numpy as jnp
from jax.experimental import pallas as pl
from jax.experimental.pallas import tpu as pltpu


def _round_up(x, m):
    return (x + m - 1) // m * m


def _ncf_kernel(num_layers, E, u_idx, i_idx, *refs):
    """refs = [emb_flat,
               (W_i, b_i) * num_layers,     # BN(eval) already folded into W/b
               wfc_row, b_fc,
               y_out, cat_out]"""
    emb_ref = refs[0]
    pos = 1
    layers = []
    for _ in range(num_layers):
        layers.append((refs[pos], refs[pos + 1]))
        pos += 2
    wfc_ref, bfc_ref = refs[pos], refs[pos + 1]
    y_ref, cat_ref = refs[pos + 2], refs[pos + 3]

    emb = emb_ref[...]                                   # (TB, F*E) f32

    # ---- MLP tower: Linear (BN folded in) -> ReLU; Dropout = identity in eval ----
    h = emb
    for (w_ref, b_ref) in layers:
        h = jnp.dot(h, w_ref[...], preferred_element_type=jnp.float32) + b_ref[...]
        h = jnp.maximum(h, 0.0)

    # ---- GMF branch: static lane slices of the flattened embedding block ----
    user_x = emb[:, u_idx * E:(u_idx + 1) * E]
    item_x = emb[:, i_idx * E:(i_idx + 1) * E]
    gmf = user_x * item_x

    # ---- cat = [gmf, h]: built once, single full-width store ----
    cat = jnp.concatenate([gmf, h], axis=1)              # (TB, E + h_last)
    cat_ref[...] = cat

    # ---- final Linear (out dim = 1): VPU multiply + lane reduction, exact sigmoid ----
    logit = jnp.sum(cat * wfc_ref[...], axis=1, keepdims=True) + bfc_ref[...]
    y_ref[...] = 1.0 / (1.0 + jnp.exp(-logit))           # exp rides the EUP slot


def ncf_forward(x_idx, params, user_field_idx, item_field_idx, *, batch_tile=4096):
    """x_idx: int32 (B, F). Returns (sigmoid(y) (B,), cat (B, E + H_last))."""
    offsets = params["offsets"]            # (F,) int32
    table = params["emb_table"]            # (sum(field_dims), E) f32

    # --- glue: embedding gather (data-dependent lookup) in plain JAX (see TODO) ---
    idx = x_idx + offsets[None, :]
    x_emb = table[idx]                     # (B, F, E)
    B, F, E = x_emb.shape
    emb_flat = x_emb.reshape(B, F * E).astype(jnp.float32)

    # --- fold BatchNorm (eval) into the Linear weights: W' = W*g, b' = b*g + s ---
    eps = 1e-5
    layer_inputs = []
    for (W, b, gamma, beta, rmean, rvar) in params["mlp"]:
        g = gamma / jnp.sqrt(rvar + eps)
        s = beta - rmean * g
        layer_inputs += [(W * g[None, :]).astype(jnp.float32),
                         (b * g + s).reshape(1, -1).astype(jnp.float32)]

    num_layers = len(params["mlp"])
    h_last = params["mlp"][-1][0].shape[1]

    # fc weight as a single (1, E + h_last) row: cat @ fc_w == sum(cat * row, axis=1)
    wfc = params["fc_w"].reshape(1, E + h_last).astype(jnp.float32)
    bfc = params["fc_b"].reshape(1, 1).astype(jnp.float32)

    # --- batch tiling: no padding; ragged last block handled by Pallas ---
    if B <= 8:
        TB = B                                            # block == full array dims
    else:
        TB = _round_up(min(batch_tile, _round_up(B, 8)), 8)
        # Keep >= 2 grid steps for large batches so v7x's two TensorCores both get
        # work along the "parallel" batch axis (no-op on 1-TC v5e/v6e).
        if TB >= B and B >= 512:
            TB = _round_up(pl.cdiv(B, 2), 8)
    grid = (pl.cdiv(B, TB),)

    kernel_inputs = [emb_flat] + layer_inputs + [wfc, bfc]

    # BlockSpecs: activations blocked over batch, weights constant (stay VMEM-resident).
    emb_spec = pl.BlockSpec((TB, F * E), lambda i: (i, 0))
    weight_specs = [pl.BlockSpec(a.shape, lambda i: (0, 0))
                    for a in kernel_inputs[1:]]
    out_specs = (
        pl.BlockSpec((TB, 1), lambda i: (i, 0)),               # y (pre-squeeze)
        pl.BlockSpec((TB, E + h_last), lambda i: (i, 0)),      # cat([gmf, mlp_out])
    )
    out_shape = (
        jax.ShapeDtypeStruct((B, 1), jnp.float32),
        jax.ShapeDtypeStruct((B, E + h_last), jnp.float32),
    )

    # Only set an explicit VMEM limit when a very large tile would exceed v5e's
    # 16 MiB default scoped-VMEM (double-buffered batch blocks + weights + headroom).
    weight_bytes = sum(int(a.size) * 4 for a in kernel_inputs[1:])
    est_vmem = 2 * TB * (F * E + (E + h_last) + 1) * 4 + 2 * weight_bytes
    vmem_limit = None
    if est_vmem > 12 * (1 << 20):
        vmem_limit = int(min(est_vmem * 3 // 2 + (4 << 20), 64 * (1 << 20)))

    y2d, cat = pl.pallas_call(
        functools.partial(_ncf_kernel, num_layers, E, user_field_idx, item_field_idx),
        out_shape=out_shape,
        grid=grid,
        in_specs=[emb_spec] + weight_specs,
        out_specs=out_specs,
        compiler_params=pltpu.CompilerParams(
            dimension_semantics=("parallel",),
            vmem_limit_bytes=vmem_limit),
    )(*kernel_inputs)

    return y2d[:, 0], cat


# Jitted entry point: static field indices and tile size, so BN-fold / reshapes / casts
# are compiled once per shape instead of dispatched as tiny ops every call.
ncf_forward_jit = jax.jit(ncf_forward, static_argnums=(2, 3),
                          static_argnames=("batch_tile",))


def ncf_reference(x_idx, params, user_field_idx, item_field_idx):
    """Pure-JAX reference (mirrors the PyTorch forward, eval mode)."""
    offsets = params["offsets"]
    table = params["emb_table"]
    x_emb = table[x_idx + offsets[None, :]]
    B, F, E = x_emb.shape
    user_x = x_emb[:, user_field_idx, :]
    item_x = x_emb[:, item_field_idx, :]
    h = x_emb.reshape(B, F * E)
    eps = 1e-5
    for (W, b, gamma, beta, rmean, rvar) in params["mlp"]:
        h = h @ W + b
        h = (h - rmean) / jnp.sqrt(rvar + eps) * gamma + beta
        h = jnp.maximum(h, 0.0)
    gmf = user_x * item_x
    cat = jnp.concatenate([gmf, h], axis=1)
    y = jax.nn.sigmoid(cat @ params["fc_w"] + params["fc_b"])[:, 0]
    return y, cat


def init_params(key, field_dims, embed_dim, mlp_dims):
    F = len(field_dims)
    vocab = int(sum(field_dims))
    offsets = jnp.asarray(
        [0] + list(jnp.cumsum(jnp.asarray(field_dims[:-1], jnp.int32))), jnp.int32
    )
    keys = jax.random.split(key, 2 + 6 * len(mlp_dims) + 2)
    params = {
        "offsets": offsets,
        "emb_table": jax.random.normal(keys[0], (vocab, embed_dim), jnp.float32) * 0.1,
    }
    mlp = []
    in_dim = F * embed_dim
    kptr = 1
    for h in mlp_dims:
        W = jax.random.normal(keys[kptr], (in_dim, h), jnp.float32) * (1.0 / jnp.sqrt(in_dim))
        b = jax.random.normal(keys[kptr + 1], (h,), jnp.float32) * 0.01
        # non-trivial BN stats so the weight fold is actually exercised
        gamma = 1.0 + 0.1 * jax.random.normal(keys[kptr + 2], (h,), jnp.float32)
        beta = 0.1 * jax.random.normal(keys[kptr + 3], (h,), jnp.float32)
        rmean = 0.1 * jax.random.normal(keys[kptr + 4], (h,), jnp.float32)
        rvar = 1.0 + 0.1 * jax.random.uniform(keys[kptr + 5], (h,), jnp.float32)
        mlp.append((W, b, gamma, beta, rmean, rvar))
        in_dim = h
        kptr += 6
    params["mlp"] = mlp
    fc_in = mlp_dims[-1] + embed_dim
    params["fc_w"] = jax.random.normal(keys[kptr], (fc_in, 1), jnp.float32) * (1.0 / jnp.sqrt(fc_in))
    params["fc_b"] = jnp.zeros((1,), jnp.float32)
    return params


if __name__ == "__main__":
    # Small, module-consistent shapes: 2 fields (user, item), embed_dim=16, MLP (32, 16).
    field_dims = (10, 20)
    user_field_idx, item_field_idx = 0, 1
    embed_dim = 16
    mlp_dims = (32, 16)
    batch = 8

    key = jax.random.PRNGKey(0)
    pkey, xkey_u, xkey_i = jax.random.split(key, 3)
    params = init_params(pkey, field_dims, embed_dim, mlp_dims)

    x_user = jax.random.randint(xkey_u, (batch, 1), 0, field_dims[0], jnp.int32)
    x_item = jax.random.randint(xkey_i, (batch, 1), 0, field_dims[1], jnp.int32)
    x = jnp.concatenate([x_user, x_item], axis=1)  # (B, F) long-style indices

    y, cat = ncf_forward_jit(x, params, user_field_idx, item_field_idx)
    jax.block_until_ready((y, cat))

    y_ref, cat_ref = ncf_reference(x, params, user_field_idx, item_field_idx)
    assert y.shape == (batch,) and cat.shape == (batch, embed_dim + mlp_dims[-1])
    assert jnp.allclose(cat, cat_ref, atol=1e-4, rtol=1e-4), "cat mismatch"
    assert jnp.allclose(y, y_ref, atol=1e-4, rtol=1e-4), "y mismatch"

    # Second check: non-multiple-of-tile batch exercises the pad-free ragged last block.
    batch2 = 13
    x2_user = jax.random.randint(jax.random.PRNGKey(1), (batch2, 1), 0, field_dims[0], jnp.int32)
    x2_item = jax.random.randint(jax.random.PRNGKey(2), (batch2, 1), 0, field_dims[1], jnp.int32)
    x2 = jnp.concatenate([x2_user, x2_item], axis=1)
    y2, cat2 = ncf_forward_jit(x2, params, user_field_idx, item_field_idx, batch_tile=8)
    jax.block_until_ready((y2, cat2))
    y2_ref, cat2_ref = ncf_reference(x2, params, user_field_idx, item_field_idx)
    assert jnp.allclose(cat2, cat2_ref, atol=1e-4, rtol=1e-4), "ragged cat mismatch"
    assert jnp.allclose(y2, y2_ref, atol=1e-4, rtol=1e-4), "ragged y mismatch"

    print("KERNEL_OK")
</pallas_src>

<mosaic_0001>
module attributes {stable_mosaic.version = 11 : i64} {
  func.func @_ncf_kernel(%arg0: i32, %arg1: memref<8x32xf32, #tpu.memory_space<vmem>>, %arg2: memref<32x32xf32, #tpu.memory_space<vmem>>, %arg3: memref<1x32xf32, #tpu.memory_space<vmem>>, %arg4: memref<32x16xf32, #tpu.memory_space<vmem>>, %arg5: memref<1x16xf32, #tpu.memory_space<vmem>>, %arg6: memref<1x32xf32, #tpu.memory_space<vmem>>, %arg7: memref<1x1xf32, #tpu.memory_space<vmem>>, %arg8: memref<8x1xf32, #tpu.memory_space<vmem>>, %arg9: memref<8x32xf32, #tpu.memory_space<vmem>>) attributes {dimension_semantics = [#tpu.dimension_semantics<parallel>], iteration_bounds = array<i64: 1>, scalar_prefetch = 0 : i64, scratch_operands = 0 : i64, tpu.core_type = #tpu.core_type<tc>, window_params = [{transform_indices = @transform_0, window_bounds = array<i64: 8, 32>}, {pipeline_mode = #tpu.pipeline_mode<synchronous>, transform_indices = @transform_1, window_bounds = array<i64: 32, 32>}, {pipeline_mode = #tpu.pipeline_mode<synchronous>, transform_indices = @transform_2, window_bounds = array<i64: 1, 32>}, {pipeline_mode = #tpu.pipeline_mode<synchronous>, transform_indices = @transform_3, window_bounds = array<i64: 32, 16>}, {pipeline_mode = #tpu.pipeline_mode<synchronous>, transform_indices = @transform_4, window_bounds = array<i64: 1, 16>}, {pipeline_mode = #tpu.pipeline_mode<synchronous>, transform_indices = @transform_5, window_bounds = array<i64: 1, 32>}, {pipeline_mode = #tpu.pipeline_mode<synchronous>, transform_indices = @transform_6, window_bounds = array<i64: 1, 1>}, {transform_indices = @transform_7, window_bounds = array<i64: 8, 1>}, {transform_indices = @transform_8, window_bounds = array<i64: 8, 32>}]} {
    %c0 = arith.constant 0 : index
    %c0_0 = arith.constant 0 : index
    %0 = vector.load %arg1[%c0, %c0_0] : memref<8x32xf32, #tpu.memory_space<vmem>>, vector<8x32xf32>
    %c0_1 = arith.constant 0 : index
    %c0_2 = arith.constant 0 : index
    %1 = vector.load %arg2[%c0_1, %c0_2] : memref<32x32xf32, #tpu.memory_space<vmem>>, vector<32x32xf32>
    %cst = arith.constant dense<0.000000e+00> : vector<8x32xf32>
    %2 = tpu.matmul %0, %1, %cst {dimension_numbers = #tpu.dot_dimension_numbers<[1], [0], [0], [1], [0, 0, 1, 1], [], []>} : vector<8x32xf32>, vector<32x32xf32>, vector<8x32xf32> -> vector<8x32xf32>
    %c0_3 = arith.constant 0 : index
    %c0_4 = arith.constant 0 : index
    %3 = vector.load %arg3[%c0_3, %c0_4] : memref<1x32xf32, #tpu.memory_space<vmem>>, vector<1x32xf32>
    %4 = vector.broadcast %3 : vector<1x32xf32> to vector<8x32xf32>
    %5 = arith.addf %2, %4 : vector<8x32xf32>
    %cst_5 = arith.constant 0.000000e+00 : f32
    %6 = vector.broadcast %cst_5 : f32 to vector<8x32xf32>
    %7 = arith.maximumf %5, %6 : vector<8x32xf32>
    %c0_6 = arith.constant 0 : index
    %c0_7 = arith.constant 0 : index
    %8 = vector.load %arg4[%c0_6, %c0_7] : memref<32x16xf32, #tpu.memory_space<vmem>>, vector<32x16xf32>
    %cst_8 = arith.constant dense<0.000000e+00> : vector<8x16xf32>
    %9 = tpu.matmul %7, %8, %cst_8 {dimension_numbers = #tpu.dot_dimension_numbers<[1], [0], [0], [1], [0, 0, 1, 1], [], []>} : vector<8x32xf32>, vector<32x16xf32>, vector<8x16xf32> -> vector<8x16xf32>
    %c0_9 = arith.constant 0 : index
    %c0_10 = arith.constant 0 : index
    %10 = vector.load %arg5[%c0_9, %c0_10] : memref<1x16xf32, #tpu.memory_space<vmem>>, vector<1x16xf32>
    %11 = vector.broadcast %10 : vector<1x16xf32> to vector<8x16xf32>
    %12 = arith.addf %9, %11 : vector<8x16xf32>
    %cst_11 = arith.constant 0.000000e+00 : f32
    %13 = vector.broadcast %cst_11 : f32 to vector<8x16xf32>
    %14 = arith.maximumf %12, %13 : vector<8x16xf32>
    %15 = vector.extract_strided_slice %0 {offsets = [0, 0], sizes = [8, 16], strides = [1, 1]} : vector<8x32xf32> to vector<8x16xf32>
    %16 = vector.extract_strided_slice %0 {offsets = [0, 16], sizes = [8, 16], strides = [1, 1]} : vector<8x32xf32> to vector<8x16xf32>
    %17 = arith.mulf %15, %16 : vector<8x16xf32>
    %18 = tpu.concatenate %17, %14 in 1 : vector<8x16xf32>, vector<8x16xf32> -> vector<8x32xf32>
    %c0_12 = arith.constant 0 : index
    %c0_13 = arith.constant 0 : index
    %19 = vector.load %arg9[%c0_12, %c0_13] : memref<8x32xf32, #tpu.memory_space<vmem>>, vector<8x32xf32>
    tpu.vector_store %arg9[%c0_12, %c0_13], %18 {strides = array<i32>} : memref<8x32xf32, #tpu.memory_space<vmem>>, vector<8x32xf32>,
    %c0_14 = arith.constant 0 : index
    %c0_15 = arith.constant 0 : index
    %20 = vector.load %arg6[%c0_14, %c0_15] : memref<1x32xf32, #tpu.memory_space<vmem>>, vector<1x32xf32>
    %21 = vector.broadcast %20 : vector<1x32xf32> to vector<8x32xf32>
    %22 = arith.mulf %18, %21 : vector<8x32xf32>
    %cst_16 = arith.constant dense<0.000000e+00> : vector<8xf32>
    %23 = vector.multi_reduction <add>, %22, %cst_16 [1] : vector<8x32xf32> to vector<8xf32>
    %24 = vector.shape_cast %23 : vector<8xf32> to vector<8x1xf32>
    %c0_17 = arith.constant 0 : index
    %c0_18 = arith.constant 0 : index
    %25 = vector.load %arg7[%c0_17, %c0_18] : memref<1x1xf32, #tpu.memory_space<vmem>>, vector<1x1xf32>
    %26 = vector.broadcast %25 : vector<1x1xf32> to vector<8x1xf32>
    %27 = arith.addf %24, %26 : vector<8x1xf32>
    %cst_19 = arith.constant 0.000000e+00 : f32
    %28 = vector.broadcast %cst_19 : f32 to vector<8x1xf32>
    %29 = arith.subf %28, %27 : vector<8x1xf32>
    %30 = math.exp %29 : vector<8x1xf32>
    %cst_20 = arith.constant 1.000000e+00 : f32
    %31 = vector.broadcast %cst_20 : f32 to vector<8x1xf32>
    %32 = arith.addf %31, %30 : vector<8x1xf32>
    %cst_21 = arith.constant 1.000000e+00 : f32
    %33 = vector.broadcast %cst_21 : f32 to vector<8x1xf32>
    %34 = arith.divf %33, %32 : vector<8x1xf32>
    %c0_22 = arith.constant 0 : index
    %c0_23 = arith.constant 0 : index
    %35 = vector.load %arg8[%c0_22, %c0_23] : memref<8x1xf32, #tpu.memory_space<vmem>>, vector<8x1xf32>
    tpu.vector_store %arg8[%c0_22, %c0_23], %34 {strides = array<i32>} : memref<8x1xf32, #tpu.memory_space<vmem>>, vector<8x1xf32>,
    return
  }
  func.func @transform_0(%arg0: i32) -> (i32, i32) {
    %c0_i32 = arith.constant 0 : i32
    %c0_i32_0 = arith.constant 0 : i32
    return %arg0, %c0_i32 : i32, i32
  }
  func.func @transform_1(%arg0: i32) -> (i32, i32) {
    %c0_i32 = arith.constant 0 : i32
    %c0_i32_0 = arith.constant 0 : i32
    %c0_i32_1 = arith.constant 0 : i32
    return %c0_i32, %c0_i32_0 : i32, i32
  }
  func.func @transform_2(%arg0: i32) -> (i32, i32) {
    %c0_i32 = arith.constant 0 : i32
    %c0_i32_0 = arith.constant 0 : i32
    %c0_i32_1 = arith.constant 0 : i32
    return %c0_i32, %c0_i32_0 : i32, i32
  }
  func.func @transform_3(%arg0: i32) -> (i32, i32) {
    %c0_i32 = arith.constant 0 : i32
    %c0_i32_0 = arith.constant 0 : i32
    %c0_i32_1 = arith.constant 0 : i32
    return %c0_i32, %c0_i32_0 : i32, i32
  }
  func.func @transform_4(%arg0: i32) -> (i32, i32) {
    %c0_i32 = arith.constant 0 : i32
    %c0_i32_0 = arith.constant 0 : i32
    %c0_i32_1 = arith.constant 0 : i32
    return %c0_i32, %c0_i32_0 : i32, i32
  }
  func.func @transform_5(%arg0: i32) -> (i32, i32) {
    %c0_i32 = arith.constant 0 : i32
    %c0_i32_0 = arith.constant 0 : i32
    %c0_i32_1 = arith.constant 0 : i32
    return %c0_i32, %c0_i32_0 : i32, i32
  }
  func.func @transform_6(%arg0: i32) -> (i32, i32) {
    %c0_i32 = arith.constant 0 : i32
    %c0_i32_0 = arith.constant 0 : i32
    %c0_i32_1 = arith.constant 0 : i32
    return %c0_i32, %c0_i32_0 : i32, i32
  }
  func.func @transform_7(%arg0: i32) -> (i32, i32) {
    %c0_i32 = arith.constant 0 : i32
    %c0_i32_0 = arith.constant 0 : i32
    return %arg0, %c0_i32 : i32, i32
  }
  func.func @transform_8(%arg0: i32) -> (i32, i32) {
    %c0_i32 = arith.constant 0 : i32
    %c0_i32_0 = arith.constant 0 : i32
    return %arg0, %c0_i32 : i32, i32
  }
}

</mosaic_0001>

<llo_original>
// kernel: ncf_forward.1
$region0: #{ncf_forward.1}
  #allocation0 [shape = 'u32[]', space=smem, size = 0x4, offset = 0x4, fixed_abs, tag = 'smem constant byte address 0x4 - core index']
  #allocation1 [shape = 'u32[72,128]{1,0:T(1,128)}', space=vmem, size = 0x9000, scoped, tag = 'internal scratch']
  #allocation2 [shape = 'f32[1,1]{1,0:T(1,128)S(1)}', space=vmem, size = 0x200, scoped, tag = 'scoped memory for ncf_forward.1']
  %s0 = inlined_call_operand.vmem [shape: f32[8,32], index: 0, kind: input, shape index: {}]
  %s1 = inlined_call_operand.vmem [shape: f32[32,32], index: 1, kind: input, shape index: {}]
  %s2 = inlined_call_operand.vmem [shape: f32[1,32], index: 2, kind: input, shape index: {}]
  %s3 = inlined_call_operand.vmem [shape: f32[32,16], index: 3, kind: input, shape index: {}]
  %s4 = inlined_call_operand.vmem [shape: f32[1,16], index: 4, kind: input, shape index: {}]
  %s5 = inlined_call_operand.vmem [shape: f32[1,32], index: 5, kind: input, shape index: {}]
  %s6 = inlined_call_operand.<no memory space> [shape: f32[1,1], index: 6, kind: input, shape index: {}]
  %s7 = inlined_call_operand.vmem [shape: f32[8,1], index: 7, kind: output, shape index: {0}]
  %s8 = inlined_call_operand.hbm [shape: f32[8,32], index: 8, kind: output, shape index: {1}]
  %9 = xla_tuple %s7, %s8
  %s10 = sld [smem:[#allocation0]]
  $region46: #{ncf_forward.1} parent=0
    _
  %s12 = ssub.s32 1, %s10
  %s13 = scalar_select 0, %s12, %s10
  %v14 = vstv %s6
  %15 = vst [vmem:[#allocation2] sm:$0x1] %v14
  $region1: #{ncf_forward.1} parent=0
    #allocation3 [shape = 'u8[4096]{0}', space=vmem, size = 0x1000, scoped, tag = 'output window, operand 1, single buffered']
    #allocation4 [shape = 's32[1]{0}', space=sflag, size = 0x4, scoped, tag = 'scoped memory for ncf_forward.1']
    %16 = vsyncpa [#allocation4], 0
    // Predicated region
    $region2: #{ncf_forward.1} parent=1 // pred_check
      _
    $region3: #{ncf_forward.1} parent=1 // pred_check_branch
      %18 = sbr.rel (0) target = $region5
    $region4: #{ncf_forward.1} parent=1 // pred_region
      _
    $region5: #{ncf_forward.1} parent=1 // pred_fallthru
      _
    // Predicated region
    $region6: #{ncf_forward.1} parent=1 // pred_check
      _
    $region7: #{ncf_forward.1} parent=1 // pred_check_branch
      %20 = sbr.rel (0) target = $region9
    $region8: #{ncf_forward.1} parent=1 // pred_region
      _
    $region9: #{ncf_forward.1} parent=1 // pred_fallthru
      _
    // Predicated region
    $region10: #{ncf_forward.1} parent=1 // pred_check
      _
    $region11: #{ncf_forward.1} parent=1 // pred_check_branch
      %22 = sbr.rel (0) target = $region13
    $region12: #{ncf_forward.1} parent=1 // pred_region
      _
    $region13: #{ncf_forward.1} parent=1 // pred_fallthru
      _
    // Predicated region
    $region14: #{ncf_forward.1} parent=1 // pred_check
      _
    $region15: #{ncf_forward.1} parent=1 // pred_check_branch
      %24 = sbr.rel (0) target = $region17
    $region16: #{ncf_forward.1} parent=1 // pred_region
      _
    $region17: #{ncf_forward.1} parent=1 // pred_fallthru
      _
    // Predicated region
    $region18: #{ncf_forward.1} parent=1 // pred_check
      _
    $region19: #{ncf_forward.1} parent=1 // pred_check_branch
      %26 = sbr.rel (0) target = $region21
    $region20: #{ncf_forward.1} parent=1 // pred_region
      _
    $region21: #{ncf_forward.1} parent=1 // pred_fallthru
      _
    // Predicated region
    $region22: #{ncf_forward.1} parent=1 // pred_check
      _
    $region23: #{ncf_forward.1} parent=1 // pred_check_branch
      %28 = sbr.rel (0) target = $region25
    $region24: #{ncf_forward.1} parent=1 // pred_region
      _
    $region25: #{ncf_forward.1} parent=1 // pred_fallthru
      _
    // Predicated region
    $region26: #{ncf_forward.1} parent=1 // pred_check
      _
    $region27: #{ncf_forward.1} parent=1 // pred_check_branch
      %30 = sbr.rel (0) target = $region29
    $region28: #{ncf_forward.1} parent=1 // pred_region
      _
    $region29: #{ncf_forward.1} parent=1 // pred_fallthru
      _
    %v31 = vld [vmem:[%s0] sm:$0xff]
    %v32 = vld [vmem:[%s1] sm:$0xff]
    %v33 = vld [vmem:[%s1 + $0x8] sm:$0xff]
    %v34 = vld [vmem:[%s1 + $0x10] sm:$0xff]
    %v35 = vld [vmem:[%s1 + $0x18] sm:$0xff]
    %v36 = vld [vmem:[%s2] sm:$0x1]
    %v38 = vperm.slane %v36, 0
    %vm40 = vcmask 261120
    %v42 = vsel %vm40, %v31, 0
    %44 = vmatpush.msra.mxu0 0.0
    %45 = vmatpush.msra.mxu0 0.0
    %46 = vmatpush.msra.mxu0 0.0
    %47 = vmatpush.msra.mxu0 0.0
    %48 = vmatpush.msra.mxu0 0.0
    %49 = vmatpush.msra.mxu0 0.0
    %50 = vmatpush.msra.mxu0 0.0
    %51 = vmatpush.msra.mxu0 0.0
    %52 = vmatpush.msra.mxu0 0.0
    %53 = vmatpush.msra.mxu0 0.0
    %54 = vmatpush.msra.mxu0 0.0
    %55 = vmatpush.msra.mxu0 0.0
    %56 = vmatpush.msra.mxu0 %v35
    %57 = vmatpush.msra.mxu0 %v34
    %58 = vmatpush.msra.mxu0 %v33
    %59 = vmatpush.msra.mxu0 %v32
    %60 = vmatmul.f32.gmra.mxu0 %v42
    %v61 = vpop.f32.mrf.mxu0
    %v62 = vadd.f32 %v38, %v61
    %63 = vdwg.mxu0
    %v64 = vmax.f32 %v62, 0.0
    %v65 = vld [vmem:[%s3] sm:$0xff]
    %v66 = vld [vmem:[%s3 + $0x8] sm:$0xff]
    %v67 = vld [vmem:[%s3 + $0x10] sm:$0xff]
    %v68 = vld [vmem:[%s3 + $0x18] sm:$0xff]
    %v69 = vld [vmem:[%s4] sm:$0x1]
    %v71 = vperm.slane %v69, 0
    %v74 = vsel %vm40, %v64, 0
    %76 = vmatpush.msra.mxu0 0.0
    %77 = vmatpush.msra.mxu0 0.0
    %78 = vmatpush.msra.mxu0 0.0
    %79 = vmatpush.msra.mxu0 0.0
    %80 = vmatpush.msra.mxu0 0.0
    %81 = vmatpush.msra.mxu0 0.0
    %82 = vmatpush.msra.mxu0 0.0
    %83 = vmatpush.msra.mxu0 0.0
    %84 = vmatpush.msra.mxu0 0.0
    %85 = vmatpush.msra.mxu0 0.0
    %86 = vmatpush.msra.mxu0 0.0
    %87 = vmatpush.msra.mxu0 0.0
    %88 = vmatpush.msra.mxu0 %v68
    %89 = vmatpush.msra.mxu0 %v67
    %90 = vmatpush.msra.mxu0 %v66
    %91 = vmatpush.msra.mxu0 %v65
    %92 = vmatmul.f32.gmra.mxu0 %v74
    %v93 = vpop.f32.mrf.mxu0
    %v94 = vadd.f32 %v71, %v93
    %95 = vdwg.mxu0
    %v96 = vmax.f32 %v94, 0.0
    %97 = vrot.lane.b32.xlu0 %v31, 112
    %v98 = vpop.permute.xlu0 %97
    %v100 = vmul.f32 %v31, %v98
    %102 = vrot.lane.b32.xlu0 %v96, 16
    %v103 = vpop.permute.xlu0 %102
    %vm105 = vcmask 130048
    %v106 = vsel %vm105, %v100, %v103
    %107 = vst.msk [vmem:[#allocation3] sm:$0xff] %vm40, %v106
    %v108 = vld [vmem:[%s5] sm:$0x1]
    %v110 = vperm.slane %v108, 0
    %v112 = vmul.f32 %v106, %v110
    %v113 = vsel %vm40, %v112, 0.0
    %114 = vadd.xlane.f32.xlu0 %v113
    %v115 = vpop.xlane.xlu0 %114
    %v116 = vld [vmem:[#allocation2] sm:$0x1]
    %v118 = vperm.slane %v116, 0
    %v120 = vadd.f32 %v115, %v118
    %v121 = vsub.f32 0.0, %v120
    %v122 = vmul.f32 %v121, 1.442695
    %v123 = vpow.pop %v122
    %v124 = vadd.f32 %v123, 1.0
    %v125 = vrcp.pop %v124
    %v126 = vmul.f32 %v124, %v125
    %v127 = vsub.f32 1.0, %v126
    %v128 = vmul.f32 %v125, %v127
    %v129 = vadd.f32 %v125, %v128
    %vm130 = vweird.f32 %v124
    %vm131 = vweird.f32 %v125
    %vm132 = vmor %vm130, %vm131
    %v133 = vsel %vm132, %v125, %v129
    %v134 = vand.u32 2147483647, %v124
    %vm135 = vcmp.eq.f32.partialorder %v134, 8.507059e+37
    %v136 = vand.u32 %v124, 2147483648
    %v137 = vor.u32 1.1754944e-38, %v136
    %v138 = vsel %vm135, %v137, %v133
    %v139 = vmul.f32 1.0, %v138
    %vm140 = vcmask 7168
    %141 = vst.msk [vmem:[%s7] sm:$0xff] %vm140, %v139
    // Predicated region
    $region30: #{ncf_forward.1} parent=1 // pred_check
      _
    $region31: #{ncf_forward.1} parent=1 // pred_check_branch
      %143 = sbr.rel (0) target = $region33
    $region32: #{ncf_forward.1} parent=1 // pred_region
      _
    $region33: #{ncf_forward.1} parent=1 // pred_fallthru
      _
    // Predicated region
    $region34: #{ncf_forward.1} parent=1 // pred_check
      _
    $region35: #{ncf_forward.1} parent=1 // pred_check_branch
      %145 = sbr.rel (0) target = $region37
    $region36: #{ncf_forward.1} parent=1 // pred_region
      %147 = vsyncadd [#allocation4], 0
      %s149 = sshll.u32 [#allocation3], 4
      %s150 = int_to_ptr.vmem [resolvable:$true] %s149
      %s151 = sshll.u32 %s8, 4
      %s152 = int_to_ptr.hbm [resolvable:$true] %s151
      %154 = dma.vmem_to_hbm [thread:$0]  %s150, 128, %s152, [#allocation4]
    $region37: #{ncf_forward.1} parent=1 // pred_fallthru
      _
    // Predicated region
    $region38: #{ncf_forward.1} parent=1 // pred_check
      _
    $region39: #{ncf_forward.1} parent=1 // pred_check_branch
      %156 = sbr.rel (0) target = $region41
    $region40: #{ncf_forward.1} parent=1 // pred_region
      _
    $region41: #{ncf_forward.1} parent=1 // pred_fallthru
      _
    // Predicated region
    $region42: #{ncf_forward.1} parent=1 // pred_check
      _
    $region43: #{ncf_forward.1} parent=1 // pred_check_branch
      %158 = sbr.rel (0) target = $region45
    $region44: #{ncf_forward.1} parent=1 // pred_region
      %160 = dma.done [#allocation4], 128
    $region45: #{ncf_forward.1} parent=1 // pred_fallthru
      _
    %161 = vsyncpa [#allocation4], 1

</llo_original>
